<compile_context>
chip_gen: v7x
topology: tpu7x:2x2x1
jax: 0.10.0
libtpu: 0.0.40
codegen_flags: <defaults>
</compile_context>

<pallas_src>
import functools

import jax
import jax.numpy as jnp
from jax.experimental import pallas as pl
from jax.experimental.pallas import tpu as pltpu


# ----------------------------------------------------------------------------
# Pallas kernel: dense noobj-masked objectness BCE (logits-space softplus)
# ----------------------------------------------------------------------------
def _noobj_conf_kernel(conf_ref, mask_ref, out_ref):
    """Accumulate [sum(noobj * softplus(z_conf)), sum(noobj)] in lanes 0/1."""
    j = pl.program_id(1)                      # spatial reduction axis

    zc = conf_ref[...].astype(jnp.float32)
    m = mask_ref[...].astype(jnp.float32)

    # BCE(sigmoid(z), 0) = softplus(z) = max(z, 0) + log(1 + exp(-|z|))
    sp = jnp.maximum(zc, 0.0) + jnp.log(1.0 + jnp.exp(-jnp.abs(zc)))
    s_bce = jnp.sum(m * sp)
    s_cnt = jnp.sum(m)

    # Pack the 2 partial sums into one lane-dense (8,128) tile.
    lane = jax.lax.broadcasted_iota(jnp.int32, (8, 128), 1)
    sub = jax.lax.broadcasted_iota(jnp.int32, (8, 128), 0)
    row0 = sub == 0
    tile = jnp.where(row0 & (lane == 0), s_bce,
                     jnp.where(row0 & (lane == 1), s_cnt, 0.0))

    @pl.when(j == 0)
    def _init():
        out_ref[...] = tile[None]

    @pl.when(j > 0)
    def _acc():
        out_ref[...] = out_ref[...] + tile[None]


def _ceil_to(v, m):
    return ((v + m - 1) // m) * m


def _softplus(z):
    return jnp.maximum(z, 0.0) + jnp.log(1.0 + jnp.exp(-jnp.abs(z)))


# ----------------------------------------------------------------------------
# Forward pass
# ----------------------------------------------------------------------------
@functools.partial(jax.jit, static_argnames=("num_classes", "img_dim"))
def region_loss_v3_forward(x, targets, anchors, *, num_classes, img_dim=416):
    B, _, g, _ = x.shape
    A = anchors.shape[0]
    nC = num_classes
    C5 = nC + 5
    S = g * g
    BA = B * A
    T = targets.shape[0]

    stride = img_dim / g
    scaled_anchors = (anchors / stride).astype(jnp.float32)

    # --- build_targets pieces -----------------------------------------------
    # TODO(synk): dynamic-shape boolean-mask gathers and scatters have no clean
    # Pallas equivalent; the target side is handled with fixed-size (T) gathers.
    tb = targets[:, 0].astype(jnp.int32)
    labels = targets[:, 1].astype(jnp.int32)
    tbox = targets[:, 2:6] * g
    gx, gy, gw, gh = tbox[:, 0], tbox[:, 1], tbox[:, 2], tbox[:, 3]
    gi = gx.astype(jnp.int32)
    gj = gy.astype(jnp.int32)

    # anchor-vs-target wh IoU: (A, T)
    inter = (jnp.minimum(scaled_anchors[:, 0:1], gw[None, :])
             * jnp.minimum(scaled_anchors[:, 1:2], gh[None, :]))
    union = (scaled_anchors[:, 0:1] * scaled_anchors[:, 1:2] + 1e-16
             + gw[None, :] * gh[None, :] - inter)
    ious = inter / union
    best_n = jnp.argmax(ious, axis=0).astype(jnp.int32)

    # Dense noobj mask — the only dense target plane still needed.
    noobj = jnp.ones((B, A, g, g), jnp.float32)
    noobj = noobj.at[tb, best_n, gj, gi].set(0.0)
    aa = jnp.broadcast_to(jnp.arange(A, dtype=jnp.int32)[:, None], (A, T))
    bb = jnp.broadcast_to(tb[None, :], (A, T))
    jj = jnp.broadcast_to(gj[None, :], (A, T))
    ii = jnp.broadcast_to(gi[None, :], (A, T))
    keep = jnp.where(ious > 0.5, 0.0, 1.0)          # ignore_thres = 0.5
    noobj = noobj.at[bb, aa, jj, ii].min(keep)

    # --- dense Pallas kernel: noobj conf BCE --------------------------------
    xr = x.reshape(B, A, C5, g, g)                  # free view (no transpose)
    conf = xr[:, :, 4, :, :].reshape(BA, S)         # only 1/C5 of x is copied

    n128 = _ceil_to(S, 128) // 128                  # 128-lane chunks total
    nh = (n128 + 1) // 2                            # chunks per parallel half
    ts_chunks = min(nh, 16)                         # cap block at 2048 lanes
    ns = (nh + ts_chunks - 1) // ts_chunks          # spatial steps per half
    TS = ts_chunks * 128
    S_pad = 2 * ns * TS
    BA_pad = _ceil_to(BA, 16)                       # bf16-safe sublane padding

    conf_p = jnp.pad(conf, ((0, BA_pad - BA), (0, S_pad - S)))
    mask_p = jnp.pad(noobj.reshape(BA, S).astype(jnp.bfloat16),
                     ((0, BA_pad - BA), (0, S_pad - S)))

    plane_spec = pl.BlockSpec((BA_pad, TS), lambda p, j: (0, p * ns + j))
    out = pl.pallas_call(
        _noobj_conf_kernel,
        out_shape=jax.ShapeDtypeStruct((2, 8, 128), jnp.float32),
        grid=(2, ns),
        in_specs=[plane_spec, plane_spec],
        out_specs=pl.BlockSpec((1, 8, 128), lambda p, j: (p, 0, 0)),
        compiler_params=pltpu.CompilerParams(
            dimension_semantics=("parallel", "arbitrary")),
    )(conf_p, mask_p)

    sums = jnp.sum(out, axis=0)[0]
    s_conf_noobj = sums[0]
    n_noobj = sums[1]

    # --- sparse obj path: unique target cells (O(T) work) --------------------
    # Boolean-mask gather over (B, A, g, g) yields rows in flat-index order and
    # collisions collapse to one row — reproduced via sorted unique indices.
    flat_idx = ((tb * A + best_n) * g + gj) * g + gi            # (T,)
    sentinel = B * A * g * g
    srt = jnp.sort(flat_idx)
    dup = jnp.concatenate([jnp.zeros((1,), jnp.bool_), srt[1:] == srt[:-1]])
    uniq = jnp.sort(jnp.where(dup, sentinel, srt))              # valid first
    valid = uniq < sentinel
    vmask = valid.astype(jnp.float32)
    n_obj = jnp.sum(vmask)                                      # == obj_mask.sum()

    idx = jnp.minimum(uniq, sentinel - 1)
    gi_s = idx % g
    rem = idx // g
    gj_s = rem % g
    rem = rem // g
    a_s = rem % A
    b_s = rem // A

    # "Last writer wins" target per unique cell (matches scatter-assign
    # semantics).  NOTE: if colliding targets carry *different* classes the
    # reference one-hot would set both bits — rare edge case, documented.
    match = flat_idx[None, :] == uniq[:, None]                  # (T, T)
    writer = jnp.max(jnp.where(match, jnp.arange(T, dtype=jnp.int32), -1),
                     axis=1)
    wsel = jnp.maximum(writer, 0)

    tx_u = (gx - jnp.floor(gx))[wsel]
    ty_u = (gy - jnp.floor(gy))[wsel]
    tw_u = jnp.log(gw / scaled_anchors[best_n, 0] + 1e-16)[wsel]
    th_u = jnp.log(gh / scaled_anchors[best_n, 1] + 1e-16)[wsel]
    lbl_u = labels[wsel]

    # Gather the C5 logits of each unique obj cell straight from x — O(T*C5),
    # no full-size f32 copy of the activation.
    glog = xr[b_s, a_s, :, gj_s, gi_s].astype(jnp.float32)      # (T, C5)
    zx, zy, zw, zh, zc = (glog[:, k] for k in range(5))
    zcls = glog[:, 5:]

    # NOTE: no divide-by-zero guard (n_obj==0 -> NaN, parity with reference);
    # logits-space BCE differs from torch BCELoss's log clamp at -100 only for
    # extreme logits.
    loss_x = jnp.sum(vmask * (jax.nn.sigmoid(zx) - tx_u) ** 2) / n_obj
    loss_y = jnp.sum(vmask * (jax.nn.sigmoid(zy) - ty_u) ** 2) / n_obj
    loss_w = jnp.sum(vmask * (zw - tw_u) ** 2) / n_obj
    loss_h = jnp.sum(vmask * (zh - th_u) ** 2) / n_obj

    sp_c = _softplus(zc)
    loss_conf_obj = jnp.sum(vmask * (sp_c - zc)) / n_obj        # target = 1
    loss_conf_noobj = s_conf_noobj / n_noobj                    # target = 0
    loss_conf = 1.0 * loss_conf_obj + 100.0 * loss_conf_noobj

    z_at_lbl = jnp.take_along_axis(zcls, lbl_u[:, None], axis=1)[:, 0]
    loss_cls = (jnp.sum(vmask * (jnp.sum(_softplus(zcls), axis=1) - z_at_lbl))
                / (n_obj * nC))

    total_loss = loss_x + loss_y + loss_w + loss_h + loss_conf + loss_cls

    # wh_loss: pred_boxes[..., 2:4][obj_mask][:shape] in grid-cell units vs
    # sqrt(|targets[:, 3:5]|) at the targets' own (normalized) scale —
    # replicated exactly as the reference computes it.
    bw = jnp.exp(zw) * scaled_anchors[a_s, 0]
    bh = jnp.exp(zh) * scaled_anchors[a_s, 1]
    a_sqrt = jnp.sqrt(jnp.abs(jnp.stack([bw, bh], axis=1)) + 1e-32)
    b_sqrt = jnp.sqrt(jnp.abs(targets[:, 3:5]) + 1e-32)
    wh_loss = jnp.sum(vmask[:, None] * (a_sqrt - b_sqrt) ** 2) / (n_obj * 2.0)

    return (total_loss, loss_x + loss_y, wh_loss, loss_conf, loss_cls,
            loss_conf_obj, loss_conf_noobj)


if __name__ == "__main__":
    key = jax.random.PRNGKey(0)
    B, num_classes = 2, 4
    anchors = jnp.array([[30.0, 61.0], [62.0, 45.0], [59.0, 119.0]],
                        jnp.float32)
    A = anchors.shape[0]
    C5 = num_classes + 5

    # targets rows: (batch_idx, class_label, cx, cy, w, h), normalized to [0,1]
    targets = jnp.array([
        [0.0, 1.0, 0.20, 0.30, 0.15, 0.20],
        [0.0, 2.0, 0.70, 0.60, 0.30, 0.25],
        [1.0, 0.0, 0.40, 0.80, 0.10, 0.35],
        [1.0, 3.0, 0.85, 0.25, 0.22, 0.18],
    ], dtype=jnp.float32)

    results = []
    for g in (16, 32):   # two grid sizes -> two kernel instantiations
        k = jax.random.fold_in(key, g)
        x = 0.5 * jax.random.normal(k, (B, A * C5, g, g), dtype=jnp.float32)
        out = region_loss_v3_forward(x, targets, anchors,
                                     num_classes=num_classes, img_dim=416)
        out = jax.block_until_ready(out)
        results.extend(float(o) for o in out)

    assert all(jnp.isfinite(jnp.array(results)))
    print("KERNEL_OK")
</pallas_src>

<mosaic_0001>
module attributes {stable_mosaic.version = 11 : i64} {
  func.func @_noobj_conf_kernel(%arg0: i32, %arg1: i32, %arg2: memref<16x128xf32, #tpu.memory_space<vmem>>, %arg3: memref<16x128xbf16, #tpu.memory_space<vmem>>, %arg4: memref<1x8x128xf32, #tpu.memory_space<vmem>>) attributes {dimension_semantics = [#tpu.dimension_semantics<parallel>, #tpu.dimension_semantics<arbitrary>], iteration_bounds = array<i64: 2, 1>, scalar_prefetch = 0 : i64, scratch_operands = 0 : i64, tpu.core_type = #tpu.core_type<tc>, window_params = [{transform_indices = @transform_0, window_bounds = array<i64: 16, 128>}, {transform_indices = @transform_1, window_bounds = array<i64: 16, 128>}, {transform_indices = @transform_2, window_bounds = array<i64: 1, 8, 128>}]} {
    %c0 = arith.constant 0 : index
    %c0_0 = arith.constant 0 : index
    %0 = vector.load %arg2[%c0, %c0_0] : memref<16x128xf32, #tpu.memory_space<vmem>>, vector<16x128xf32>
    %c0_1 = arith.constant 0 : index
    %c0_2 = arith.constant 0 : index
    %1 = vector.load %arg3[%c0_1, %c0_2] : memref<16x128xbf16, #tpu.memory_space<vmem>>, vector<16x128xbf16>
    %2 = arith.extf %1 : vector<16x128xbf16> to vector<16x128xf32>
    %cst = arith.constant 0.000000e+00 : f32
    %3 = vector.broadcast %cst : f32 to vector<16x128xf32>
    %4 = arith.maximumf %0, %3 : vector<16x128xf32>
    %5 = math.absf %0 : vector<16x128xf32>
    %cst_3 = arith.constant 0.000000e+00 : f32
    %6 = vector.broadcast %cst_3 : f32 to vector<16x128xf32>
    %7 = arith.subf %6, %5 : vector<16x128xf32>
    %8 = math.exp %7 : vector<16x128xf32>
    %cst_4 = arith.constant 1.000000e+00 : f32
    %9 = vector.broadcast %cst_4 : f32 to vector<16x128xf32>
    %10 = arith.addf %9, %8 : vector<16x128xf32>
    %11 = math.log %10 : vector<16x128xf32>
    %12 = arith.addf %4, %11 : vector<16x128xf32>
    %13 = arith.mulf %2, %12 : vector<16x128xf32>
    %14 = vector.shape_cast %13 : vector<16x128xf32> to vector<1x16x128xf32>
    %cst_5 = arith.constant dense<0.000000e+00> : vector<1xf32>
    %15 = vector.multi_reduction <add>, %14, %cst_5 [1, 2] : vector<1x16x128xf32> to vector<1xf32>
    %16 = vector.shape_cast %15 : vector<1xf32> to vector<1x1x1xf32>
    %17 = vector.extract %16[0, 0, 0] : f32 from vector<1x1x1xf32>
    %18 = vector.shape_cast %2 : vector<16x128xf32> to vector<1x16x128xf32>
    %cst_6 = arith.constant dense<0.000000e+00> : vector<1xf32>
    %19 = vector.multi_reduction <add>, %18, %cst_6 [1, 2] : vector<1x16x128xf32> to vector<1xf32>
    %20 = vector.shape_cast %19 : vector<1xf32> to vector<1x1x1xf32>
    %21 = vector.extract %20[0, 0, 0] : f32 from vector<1x1x1xf32>
    %22 = tpu.iota {dimensions = array<i32: 1>} : vector<8x128xi32>
    %23 = tpu.iota {dimensions = array<i32: 0>} : vector<8x128xi32>
    %c0_i32 = arith.constant 0 : i32
    %24 = vector.broadcast %c0_i32 : i32 to vector<8x128xi32>
    %25 = arith.cmpi eq, %23, %24 : vector<8x128xi32>
    %c0_i32_7 = arith.constant 0 : i32
    %26 = vector.broadcast %c0_i32_7 : i32 to vector<8x128xi32>
    %27 = arith.cmpi eq, %22, %26 : vector<8x128xi32>
    %28 = arith.andi %25, %27 : vector<8x128xi1>
    %c1_i32 = arith.constant 1 : i32
    %29 = vector.broadcast %c1_i32 : i32 to vector<8x128xi32>
    %30 = arith.cmpi eq, %22, %29 : vector<8x128xi32>
    %31 = arith.andi %25, %30 : vector<8x128xi1>
    %cst_8 = arith.constant 0.000000e+00 : f32
    %32 = vector.broadcast %21 : f32 to vector<8x128xf32>
    %33 = vector.broadcast %cst_8 : f32 to vector<8x128xf32>
    %34 = arith.select %31, %32, %33 : vector<8x128xi1>, vector<8x128xf32>
    %35 = vector.broadcast %17 : f32 to vector<8x128xf32>
    %36 = arith.select %28, %35, %34 : vector<8x128xi1>, vector<8x128xf32>
    %c0_i32_9 = arith.constant 0 : i32
    %37 = arith.cmpi eq, %arg1, %c0_i32_9 : i32
    %38 = arith.extui %37 : i1 to i32
    %c0_i32_10 = arith.constant 0 : i32
    %39 = arith.cmpi ne, %38, %c0_i32_10 : i32
    scf.if %39 {
      %43 = vector.shape_cast %36 : vector<8x128xf32> to vector<1x8x128xf32>
      %c0_13 = arith.constant 0 : index
      %c0_14 = arith.constant 0 : index
      %c0_15 = arith.constant 0 : index
      %44 = vector.load %arg4[%c0_13, %c0_14, %c0_15] : memref<1x8x128xf32, #tpu.memory_space<vmem>>, vector<1x8x128xf32>
      tpu.vector_store %arg4[%c0_13, %c0_14, %c0_15], %43 {strides = array<i32>} : memref<1x8x128xf32, #tpu.memory_space<vmem>>, vector<1x8x128xf32>,
    } else {
    }
    %c0_i32_11 = arith.constant 0 : i32
    %40 = arith.cmpi sgt, %arg1, %c0_i32_11 : i32
    %41 = arith.extui %40 : i1 to i32
    %c0_i32_12 = arith.constant 0 : i32
    %42 = arith.cmpi ne, %41, %c0_i32_12 : i32
    scf.if %42 {
      %c0_13 = arith.constant 0 : index
      %c0_14 = arith.constant 0 : index
      %c0_15 = arith.constant 0 : index
      %43 = vector.load %arg4[%c0_13, %c0_14, %c0_15] : memref<1x8x128xf32, #tpu.memory_space<vmem>>, vector<1x8x128xf32>
      %44 = vector.shape_cast %36 : vector<8x128xf32> to vector<1x8x128xf32>
      %45 = arith.addf %43, %44 : vector<1x8x128xf32>
      %c0_16 = arith.constant 0 : index
      %c0_17 = arith.constant 0 : index
      %c0_18 = arith.constant 0 : index
      %46 = vector.load %arg4[%c0_16, %c0_17, %c0_18] : memref<1x8x128xf32, #tpu.memory_space<vmem>>, vector<1x8x128xf32>
      tpu.vector_store %arg4[%c0_16, %c0_17, %c0_18], %45 {strides = array<i32>} : memref<1x8x128xf32, #tpu.memory_space<vmem>>, vector<1x8x128xf32>,
    } else {
    }
    return
  }
  func.func @transform_0(%arg0: i32, %arg1: i32) -> (i32, i32) {
    %c1_i32 = arith.constant 1 : i32
    %0 = arith.muli %arg0, %c1_i32 : i32
    %1 = arith.addi %0, %arg1 : i32
    %c0_i32 = arith.constant 0 : i32
    %c0_i32_0 = arith.constant 0 : i32
    return %c0_i32, %1 : i32, i32
  }
  func.func @transform_1(%arg0: i32, %arg1: i32) -> (i32, i32) {
    %c1_i32 = arith.constant 1 : i32
    %0 = arith.muli %arg0, %c1_i32 : i32
    %1 = arith.addi %0, %arg1 : i32
    %c0_i32 = arith.constant 0 : i32
    %c0_i32_0 = arith.constant 0 : i32
    return %c0_i32, %1 : i32, i32
  }
  func.func @transform_2(%arg0: i32, %arg1: i32) -> (i32, i32, i32) {
    %c0_i32 = arith.constant 0 : i32
    %c0_i32_0 = arith.constant 0 : i32
    %c0_i32_1 = arith.constant 0 : i32
    return %arg0, %c0_i32, %c0_i32_0 : i32, i32, i32
  }
}

</mosaic_0001>

<llo_original>
// kernel: squeeze.30
$region0: #{squeeze.30}
  %s0 = inlined_call_operand.vmem [shape: f32[2,3,1,16,16], index: 0, kind: input, shape index: {}]
  %s1 = inlined_call_operand.vmem [shape: f32[6,256], index: 1, kind: output, shape index: {}]
  %v2 = vld [vmem:[%s0] ss:$8 sm:$0xf]
  %v3 = vld [vmem:[%s0] ss:$8 sm:$0xf0]
  %vm4 = vcmask 1047556
  %v5 = vsel %vm4, %v3, %v2
  %vm6 = vcmask 130048
  %7 = vst.msk [vmem:[%s1] ss:$8 sm:$0x3] %vm6, %v5
  %s8 = scalar_lea.vmem %s1, 4294967281
  %9 = vst.msk [vmem:[%s8] ss:$8 sm:$0xc] %vm6, %v5
  %s10 = scalar_lea.vmem %s1, 4294967266
  %11 = vst.msk [vmem:[%s10] ss:$8 sm:$0x30] %vm6, %v5
  %s12 = scalar_lea.vmem %s1, 4294967251
  %13 = vst.msk [vmem:[%s12] ss:$8 sm:$0xc0] %vm6, %v5
  %s14 = scalar_lea.vmem %s0, 64
  %v15 = vld [vmem:[%s14] ss:$8 sm:$0xf]
  %vm16 = vcmask 130048
  %s17 = scalar_lea.vmem %s1, 4
  %18 = vst.msk [vmem:[%s17] ss:$8 sm:$0x3] %vm16, %v15
  %s19 = scalar_lea.vmem %s1, 4294967285
  %20 = vst.msk [vmem:[%s19] ss:$8 sm:$0xc] %vm16, %v15
  %s21 = scalar_lea.vmem %s0, 7
  %s22 = smov 3
  %v23 = vld [vmem:[%s21] ss:$16 sm:%s22]
  %s24 = scalar_lea.vmem %s0, 7
  %s25 = smov 12
  %v26 = vld [vmem:[%s24] ss:$16 sm:%s25]
  %vm27 = vcmask 1043458
  %v28 = vsel %vm27, %v26, %v23
  %s29 = scalar_lea.vmem %s0, 7
  %s30 = smov 48
  %v31 = vld [vmem:[%s29] ss:$16 sm:%s30]
  %vm32 = vcmask 1045508
  %v33 = vsel %vm32, %v31, %v28
  %s34 = scalar_lea.vmem %s0, 4294967215
  %s35 = smov 192
  %v36 = vld [vmem:[%s34] ss:$16 sm:%s35]
  %vm37 = vcmask 1047558
  %v38 = vsel %vm37, %v36, %v33
  %39 = vrot.lane.b32.xlu0 %v38, 112
  %v40 = vpop.permute.xlu0 %39
  %vm41 = vcmask 1048448
  %42 = vst.msk [vmem:[%s1] sm:$0x3f] %vm41, %v40
  %s43 = scalar_lea.vmem %s1, 2
  %44 = vst.msk [vmem:[%s43] sm:$0xc0] %vm41, %v40
  %s45 = scalar_lea.vmem %s0, 47
  %s46 = smov 3
  %v47 = vld [vmem:[%s45] ss:$16 sm:%s46]
  %s48 = scalar_lea.vmem %s0, 47
  %s49 = smov 12
  %v50 = vld [vmem:[%s48] ss:$16 sm:%s49]
  %vm51 = vcmask 1043458
  %v52 = vsel %vm51, %v50, %v47
  %53 = vrot.lane.b32.xlu0 %v52, 112
  %v54 = vpop.permute.xlu0 %53
  %vm55 = vcmask 1048448
  %s56 = scalar_lea.vmem %s1, 10
  %57 = vst.msk [vmem:[%s56] sm:$0xf] %vm55, %v54
  %s58 = scalar_lea.vmem %s0, 6
  %s59 = smov 3
  %v60 = vld [vmem:[%s58] ss:$16 sm:%s59]
  %s61 = scalar_lea.vmem %s0, 6
  %s62 = smov 12
  %v63 = vld [vmem:[%s61] ss:$16 sm:%s62]
  %vm64 = vcmask 1043458
  %v65 = vsel %vm64, %v63, %v60
  %s66 = scalar_lea.vmem %s0, 6
  %s67 = smov 48
  %v68 = vld [vmem:[%s66] ss:$16 sm:%s67]
  %vm69 = vcmask 1045508
  %v70 = vsel %vm69, %v68, %v65
  %s71 = scalar_lea.vmem %s0, 4294967214
  %s72 = smov 192
  %v73 = vld [vmem:[%s71] ss:$16 sm:%s72]
  %vm74 = vcmask 1047558
  %v75 = vsel %vm74, %v73, %v70
  %76 = vrot.lane.b32.xlu0 %v75, 96
  %v77 = vpop.permute.xlu0 %76
  %vm78 = vcmask 917248
  %79 = vst.msk [vmem:[%s1] sm:$0x3f] %vm78, %v77
  %s80 = scalar_lea.vmem %s1, 2
  %81 = vst.msk [vmem:[%s80] sm:$0xc0] %vm78, %v77
  %s82 = scalar_lea.vmem %s0, 46
  %s83 = smov 3
  %v84 = vld [vmem:[%s82] ss:$16 sm:%s83]
  %s85 = scalar_lea.vmem %s0, 46
  %s86 = smov 12
  %v87 = vld [vmem:[%s85] ss:$16 sm:%s86]
  %vm88 = vcmask 1043458
  %v89 = vsel %vm88, %v87, %v84
  %90 = vrot.lane.b32.xlu0 %v89, 96
  %v91 = vpop.permute.xlu0 %90
  %vm92 = vcmask 917248
  %s93 = scalar_lea.vmem %s1, 10
  %94 = vst.msk [vmem:[%s93] sm:$0xf] %vm92, %v91
  %s95 = scalar_lea.vmem %s0, 5
  %s96 = smov 3
  %v97 = vld [vmem:[%s95] ss:$16 sm:%s96]
  %s98 = scalar_lea.vmem %s0, 5
  %s99 = smov 12
  %v100 = vld [vmem:[%s98] ss:$16 sm:%s99]
  %vm101 = vcmask 1043458
  %v102 = vsel %vm101, %v100, %v97
  %s103 = scalar_lea.vmem %s0, 5
  %s104 = smov 48
  %v105 = vld [vmem:[%s103] ss:$16 sm:%s104]
  %vm106 = vcmask 1045508
  %v107 = vsel %vm106, %v105, %v102
  %s108 = scalar_lea.vmem %s0, 4294967213
  %s109 = smov 192
  %v110 = vld [vmem:[%s108] ss:$16 sm:%s109]
  %vm111 = vcmask 1047558
  %v112 = vsel %vm111, %v110, %v107
  %113 = vrot.lane.b32.xlu0 %v112, 80
  %v114 = vpop.permute.xlu0 %113
  %vm115 = vcmask 786048
  %116 = vst.msk [vmem:[%s1] sm:$0x3f] %vm115, %v114
  %s117 = scalar_lea.vmem %s1, 2
  %118 = vst.msk [vmem:[%s117] sm:$0xc0] %vm115, %v114
  %s119 = scalar_lea.vmem %s0, 45
  %s120 = smov 3
  %v121 = vld [vmem:[%s119] ss:$16 sm:%s120]
  %s122 = scalar_lea.vmem %s0, 45
  %s123 = smov 12
  %v124 = vld [vmem:[%s122] ss:$16 sm:%s123]
  %vm125 = vcmask 1043458
  %v126 = vsel %vm125, %v124, %v121
  %127 = vrot.lane.b32.xlu0 %v126, 80
  %v128 = vpop.permute.xlu0 %127
  %vm129 = vcmask 786048
  %s130 = scalar_lea.vmem %s1, 10
  %131 = vst.msk [vmem:[%s130] sm:$0xf] %vm129, %v128
  %s132 = scalar_lea.vmem %s0, 4
  %s133 = smov 3
  %v134 = vld [vmem:[%s132] ss:$16 sm:%s133]
  %s135 = scalar_lea.vmem %s0, 4
  %s136 = smov 12
  %v137 = vld [vmem:[%s135] ss:$16 sm:%s136]
  %vm138 = vcmask 1043458
  %v139 = vsel %vm138, %v137, %v134
  %s140 = scalar_lea.vmem %s0, 4
  %s141 = smov 48
  %v142 = vld [vmem:[%s140] ss:$16 sm:%s141]
  %vm143 = vcmask 1045508
  %v144 = vsel %vm143, %v142, %v139
  %s145 = scalar_lea.vmem %s0, 4294967212
  %s146 = smov 192
  %v147 = vld [vmem:[%s145] ss:$16 sm:%s146]
  %vm148 = vcmask 1047558
  %v149 = vsel %vm148, %v147, %v144
  %150 = vrot.lane.b32.xlu0 %v149, 64
  %v151 = vpop.permute.xlu0 %150
  %vm152 = vcmask 654848
  %153 = vst.msk [vmem:[%s1] sm:$0x3f] %vm152, %v151
  %s154 = scalar_lea.vmem %s1, 2
  %155 = vst.msk [vmem:[%s154] sm:$0xc0] %vm152, %v151
  %s156 = scalar_lea.vmem %s0, 44
  %s157 = smov 3
  %v158 = vld [vmem:[%s156] ss:$16 sm:%s157]
  %s159 = scalar_lea.vmem %s0, 44
  %s160 = smov 12
  %v161 = vld [vmem:[%s159] ss:$16 sm:%s160]
  %vm162 = vcmask 1043458
  %v163 = vsel %vm162, %v161, %v158
  %164 = vrot.lane.b32.xlu0 %v163, 64
  %v165 = vpop.permute.xlu0 %164
  %vm166 = vcmask 654848
  %s167 = scalar_lea.vmem %s1, 10
  %168 = vst.msk [vmem:[%s167] sm:$0xf] %vm166, %v165
  %s169 = scalar_lea.vmem %s0, 3
  %s170 = smov 3
  %v171 = vld [vmem:[%s169] ss:$16 sm:%s170]
  %s172 = scalar_lea.vmem %s0, 3
  %s173 = smov 12
  %v174 = vld [vmem:[%s172] ss:$16 sm:%s173]
  %vm175 = vcmask 1043458
  %v176 = vsel %vm175, %v174, %v171
  %s177 = scalar_lea.vmem %s0, 3
  %s178 = smov 48
  %v179 = vld [vmem:[%s177] ss:$16 sm:%s178]
  %vm180 = vcmask 1045508
  %v181 = vsel %vm180, %v179, %v176
  %s182 = scalar_lea.vmem %s0, 4294967211
  %s183 = smov 192
  %v184 = vld [vmem:[%s182] ss:$16 sm:%s183]
  %vm185 = vcmask 1047558
  %v186 = vsel %vm185, %v184, %v181
  %187 = vrot.lane.b32.xlu0 %v186, 48
  %v188 = vpop.permute.xlu0 %187
  %vm189 = vcmask 523648
  %190 = vst.msk [vmem:[%s1] sm:$0x3f] %vm189, %v188
  %s191 = scalar_lea.vmem %s1, 2
  %192 = vst.msk [vmem:[%s191] sm:$0xc0] %vm189, %v188
  %s193 = scalar_lea.vmem %s0, 43
  %s194 = smov 3
  %v195 = vld [vmem:[%s193] ss:$16 sm:%s194]
  %s196 = scalar_lea.vmem %s0, 43
  %s197 = smov 12
  %v198 = vld [vmem:[%s196] ss:$16 sm:%s197]
  %vm199 = vcmask 1043458
  %v200 = vsel %vm199, %v198, %v195
  %201 = vrot.lane.b32.xlu0 %v200, 48
  %v202 = vpop.permute.xlu0 %201
  %vm203 = vcmask 523648
  %s204 = scalar_lea.vmem %s1, 10
  %205 = vst.msk [vmem:[%s204] sm:$0xf] %vm203, %v202
  %s206 = scalar_lea.vmem %s0, 2
  %s207 = smov 3
  %v208 = vld [vmem:[%s206] ss:$16 sm:%s207]
  %s209 = scalar_lea.vmem %s0, 2
  %s210 = smov 12
  %v211 = vld [vmem:[%s209] ss:$16 sm:%s210]
  %vm212 = vcmask 1043458
  %v213 = vsel %vm212, %v211, %v208
  %s214 = scalar_lea.vmem %s0, 2
  %s215 = smov 48
  %v216 = vld [vmem:[%s214] ss:$16 sm:%s215]
  %vm217 = vcmask 1045508
  %v218 = vsel %vm217, %v216, %v213
  %s219 = scalar_lea.vmem %s0, 4294967210
  %s220 = smov 192
  %v221 = vld [vmem:[%s219] ss:$16 sm:%s220]
  %vm222 = vcmask 1047558
  %v223 = vsel %vm222, %v221, %v218
  %224 = vrot.lane.b32.xlu0 %v223, 32
  %v225 = vpop.permute.xlu0 %224
  %vm226 = vcmask 392448
  %227 = vst.msk [vmem:[%s1] sm:$0x3f] %vm226, %v225
  %s228 = scalar_lea.vmem %s1, 2
  %229 = vst.msk [vmem:[%s228] sm:$0xc0] %vm226, %v225
  %s230 = scalar_lea.vmem %s0, 42
  %s231 = smov 3
  %v232 = vld [vmem:[%s230] ss:$16 sm:%s231]
  %s233 = scalar_lea.vmem %s0, 42
  %s234 = smov 12
  %v235 = vld [vmem:[%s233] ss:$16 sm:%s234]
  %vm236 = vcmask 1043458
  %v237 = vsel %vm236, %v235, %v232
  %238 = vrot.lane.b32.xlu0 %v237, 32
  %v239 = vpop.permute.xlu0 %238
  %vm240 = vcmask 392448
  %s241 = scalar_lea.vmem %s1, 10
  %242 = vst.msk [vmem:[%s241] sm:$0xf] %vm240, %v239
  %s243 = scalar_lea.vmem %s0, 1
  %s244 = smov 3
  %v245 = vld [vmem:[%s243] ss:$16 sm:%s244]
  %s246 = scalar_lea.vmem %s0, 1
  %s247 = smov 12
  %v248 = vld [vmem:[%s246] ss:$16 sm:%s247]
  %vm249 = vcmask 1043458
  %v250 = vsel %vm249, %v248, %v245
  %s251 = scalar_lea.vmem %s0, 1
  %s252 = smov 48
  %v253 = vld [vmem:[%s251] ss:$16 sm:%s252]
  %vm254 = vcmask 1045508
  %v255 = vsel %vm254, %v253, %v250
  %s256 = scalar_lea.vmem %s0, 4294967209
  %s257 = smov 192
  %v258 = vld [vmem:[%s256] ss:$16 sm:%s257]
  %vm259 = vcmask 1047558
  %v260 = vsel %vm259, %v258, %v255
  %261 = vrot.lane.b32.xlu0 %v260, 16
  %v262 = vpop.permute.xlu0 %261
  %vm263 = vcmask 261248
  %264 = vst.msk [vmem:[%s1] sm:$0x3f] %vm263, %v262
  %s265 = scalar_lea.vmem %s1, 2
  %266 = vst.msk [vmem:[%s265] sm:$0xc0] %vm263, %v262
  %s267 = scalar_lea.vmem %s0, 41
  %s268 = smov 3
  %v269 = vld [vmem:[%s267] ss:$16 sm:%s268]
  %s270 = scalar_lea.vmem %s0, 41
  %s271 = smov 12
  %v272 = vld [vmem:[%s270] ss:$16 sm:%s271]
  %vm273 = vcmask 1043458
  %v274 = vsel %vm273, %v272, %v269
  %275 = vrot.lane.b32.xlu0 %v274, 16
  %v276 = vpop.permute.xlu0 %275
  %vm277 = vcmask 261248
  %s278 = scalar_lea.vmem %s1, 10
  %279 = vst.msk [vmem:[%s278] sm:$0xf] %vm277, %v276

// kernel: region_loss_v3_forward.1
$region0: #{region_loss_v3_forward.1}
  #allocation0 [shape = 'u32[]', space=smem, size = 0x4, offset = 0x4, fixed_abs, tag = 'smem constant byte address 0x4 - core index']
  #allocation1 [shape = 'u32[144,128]{1,0:T(1,128)}', space=vmem, size = 0x12000, scoped, tag = 'internal scratch']
  %s0 = inlined_call_operand.vmem [shape: f32[16,256], index: 0, kind: input, shape index: {}]
  %s1 = inlined_call_operand.vmem [shape: bf16[16,256], index: 1, kind: input, shape index: {}]
  %s2 = inlined_call_operand.vmem [shape: f32[2,8,128], index: 2, kind: output, shape index: {}]
  %s3 = sld [smem:[#allocation0]]
  $region128: #{region_loss_v3_forward.1} parent=0
    _
  %s5 = ssub.s32 1, %s3
  %s6 = scalar_select 0, %s5, %s3
  $region1: #{region_loss_v3_forward.1} parent=0
    #allocation2 [shape = 'u8[16384]{0}', space=vmem, size = 0x4000, scoped, tag = 'input window, operand 0']
    #allocation3 [shape = 'u8[8192]{0}', space=vmem, size = 0x2000, scoped, tag = 'input window, operand 1']
    loop: start=0, step=1, limit=4
    $region2: #{region_loss_v3_forward.1} parent=1 // loop_pre_header
      _
    $region3: #{region_loss_v3_forward.1} parent=1 // loop_header
      %s8 = sphi 0, %s12
      %p9 = scmp.ge.s32.totalorder %s8, 4
      %s15 = sphi 0, %s27
      %s16 = sphi 0, %s23
      %s17 = sphi 0, %s15
      %s18 = sphi 0, %s16
      %s19 = sphi 0, %s17
      %s20 = sphi 0, %s18
      %s32 = sphi 0, %s34
      %s35 = sphi 0, %s32
      %s36 = sphi 0, %s35
      %s52 = sphi 0, %s36
      %s60 = sphi 0, %s62
      %s63 = sphi 0, %s60
      %s64 = sphi 0, %s63
      %s80 = sphi 0, %s64
      %s86 = sphi 0, %s88
      %s89 = sphi 0, %s86
      %s90 = sphi 0, %s89
      %s106 = sphi 0, %s90
    $region4: #{region_loss_v3_forward.1} parent=1 // loop_header_branch
      %11 = sbr.rel (%p9) target = $region8
    $region5: #{region_loss_v3_forward.1} parent=1 // loop_body
      %s13 = ssub.s32 %s8, 1
      %s14 = ssub.s32 %s8, 2
      %s21 = sadd.s32 1, %s16
      %p22 = scmp.ge.s32.totalorder %s21, 1
      %s23 = scalar_select %p22, 0, %s21
      %s24 = sadd.s32 1, %s15
      %s25 = scalar_select %p22, %s24, %s15
      %p26 = scmp.ge.s32.totalorder %s25, 2
      %s27 = scalar_select %p26, 0, %s25
      %s28 = sadd.s32 %s15, %s16
      %s29 = sadd.s32 %s27, %s23
      %s30 = ssub.s32 %s28, %s29
      %p31 = scmp.eq.s32.totalorder %s30, 0
      %s33 = sadd.s32 %s32, 1
      %s34 = scalar_select %p31, %s32, %s33
      %p37 = pneg %p31
      %p38 = scmp.eq.s32.totalorder %s8, 1
      %p39 = por %p37, %p38
      %p40 = scmp.ne.s32.totalorder %s32, %s35
      %p41 = scmp.eq.s32.totalorder %s8, 0
      %p42 = por %p40, %p41
      %p43 = scmp.ne.s32.totalorder %s32, %s35
      %p44 = scmp.eq.s32.totalorder %s13, 1
      %p45 = por %p43, %p44
      %p46 = scmp.ne.s32.totalorder %s35, %s36
      %p47 = scmp.eq.s32.totalorder %s13, 0
      %p48 = por %p46, %p47
      %p49 = scmp.ne.s32.totalorder %s35, %s36
      %p50 = scmp.eq.s32.totalorder %s14, 1
      %p51 = por %p49, %p50
      %p53 = scmp.ne.s32.totalorder %s36, %s52
      %p54 = scmp.eq.s32.totalorder %s14, 0
      %p55 = por %p53, %p54
      %s56 = sadd.s32 %s15, %s16
      %s57 = sadd.s32 %s27, %s23
      %s58 = ssub.s32 %s56, %s57
      %p59 = scmp.eq.s32.totalorder %s58, 0
      %s61 = sadd.s32 %s60, 1
      %s62 = scalar_select %p59, %s60, %s61
      %p65 = pneg %p59
      %p66 = scmp.eq.s32.totalorder %s8, 1
      %p67 = por %p65, %p66
      %p68 = scmp.ne.s32.totalorder %s60, %s63
      %p69 = scmp.eq.s32.totalorder %s8, 0
      %p70 = por %p68, %p69
      %p71 = scmp.ne.s32.totalorder %s60, %s63
      %p72 = scmp.eq.s32.totalorder %s13, 1
      %p73 = por %p71, %p72
      %p74 = scmp.ne.s32.totalorder %s63, %s64
      %p75 = scmp.eq.s32.totalorder %s13, 0
      %p76 = por %p74, %p75
      %p77 = scmp.ne.s32.totalorder %s63, %s64
      %p78 = scmp.eq.s32.totalorder %s14, 1
      %p79 = por %p77, %p78
      %p81 = scmp.ne.s32.totalorder %s64, %s80
      %p82 = scmp.eq.s32.totalorder %s14, 0
      %p83 = por %p81, %p82
      %s84 = ssub.s32 %s15, %s27
      %p85 = scmp.eq.s32.totalorder %s84, 0
      %s87 = sadd.s32 %s86, 1
      %s88 = scalar_select %p85, %s86, %s87
      %p91 = pneg %p85
      %p92 = scmp.eq.s32.totalorder %s8, 1
      %p93 = por %p91, %p92
      %p94 = scmp.ne.s32.totalorder %s86, %s89
      %p95 = scmp.eq.s32.totalorder %s8, 0
      %p96 = por %p94, %p95
      %p97 = scmp.ne.s32.totalorder %s86, %s89
      %p98 = scmp.eq.s32.totalorder %s13, 1
      %p99 = por %p97, %p98
      %p100 = scmp.ne.s32.totalorder %s89, %s90
      %p101 = scmp.eq.s32.totalorder %s13, 0
      %p102 = por %p100, %p101
      %p103 = scmp.ne.s32.totalorder %s89, %s90
      %p104 = scmp.eq.s32.totalorder %s14, 1
      %p105 = por %p103, %p104
      %p107 = scmp.ne.s32.totalorder %s90, %s106
      %p108 = scmp.eq.s32.totalorder %s14, 0
      %p109 = por %p107, %p108
      %p110 = scmp.le.s32.totalorder 1, %s8
      %p111 = scmp.lt.s32.totalorder %s8, 3
      %p112 = pnand %p110, %p111
      %p113 = pneg %p112
      // Predicated region
      $region9: #{region_loss_v3_forward.1} parent=5 // pred_check
        _
      $region10: #{region_loss_v3_forward.1} parent=5 // pred_check_branch
        %115 = sbr.rel (%p112) target = $region12
      $region11: #{region_loss_v3_forward.1} parent=5 // pred_region
        %s116 = ssub.s32 %s8, 1
      $region12: #{region_loss_v3_forward.1} parent=5 // pred_fallthru
        _
      %p117 = scmp.lt.s32.totalorder %s8, 2
      // Predicated region
      $region13: #{region_loss_v3_forward.1} parent=5 // pred_check
        %p118 = pneg %p117
      $region14: #{region_loss_v3_forward.1} parent=5 // pred_check_branch
        %120 = sbr.rel (%p118) target = $region16
      $region15: #{region_loss_v3_forward.1} parent=5 // pred_region
        // Predicated region
        $region17: #{region_loss_v3_forward.1} parent=15 // pred_check
          %p121 = pneg %p42
        $region18: #{region_loss_v3_forward.1} parent=15 // pred_check_branch
          %123 = sbr.rel (%p121) target = $region20
        $region19: #{region_loss_v3_forward.1} parent=15 // pred_region
          %s124 = sand.u32 %s32, 1
          %s125 = sand.u32 %s32, 1
          %s126 = smul.addr %s125, 16
          %s127 = scalar_lea.vmem [#allocation2], %s126
          %s128 = sadd.s32 %s15, %s16
          %s129 = smul.addr %s128, 8
          %s130 = scalar_lea.vmem %s0, %s129
          // Predicated region
          $region21: #{region_loss_v3_forward.1} parent=19 // pred_check
            _
          $region22: #{region_loss_v3_forward.1} parent=19 // pred_check_branch
            %132 = sbr.rel (0) target = $region24
          $region23: #{region_loss_v3_forward.1} parent=19 // pred_region
            // Predicated region
            $region25: #{region_loss_v3_forward.1} parent=23 // pred_check
              _
            $region26: #{region_loss_v3_forward.1} parent=23 // pred_check_branch
              %134 = sbr.rel (0) target = $region28
            $region27: #{region_loss_v3_forward.1} parent=23 // pred_region
              // Predicated region
              $region40: #{region_loss_v3_forward.1} parent=27 // pred_check
                _
              $region41: #{region_loss_v3_forward.1} parent=27 // pred_check_branch
                %151 = sbr.rel (0) target = $region43
              $region42: #{region_loss_v3_forward.1} parent=27 // pred_region
                loop: start=0, step=1, limit=1
                $region44: #{region_loss_v3_forward.1} parent=42 // loop_pre_header
                  _
                $region45: #{region_loss_v3_forward.1} parent=42 // loop_header
                  %s153 = sphi 0, %s157
                  %p154 = scmp.ge.s32.totalorder %s153, 1
                  %s158 = sphi %s130, %s130
                  %s159 = sphi %s127, %s127
                $region46: #{region_loss_v3_forward.1} parent=42 // loop_header_branch
                  %156 = sbr.rel (%p154) target = $region50
                $region47: #{region_loss_v3_forward.1} parent=42 // loop_body
                  %v160 = vld [vmem:[%s158] sm:$0xff]
                  %161 = vst [vmem:[%s159] sm:$0xff] %v160
                  %v162 = vld [vmem:[%s158 + $0x10] sm:$0xff]
                  %163 = vst [vmem:[%s159 + $0x8] sm:$0xff] %v162
                $region48: #{region_loss_v3_forward.1} parent=42 // loop_footer
                  %s157 = sadd.s32 1, %s153
                $region49: #{region_loss_v3_forward.1} parent=42 // loop_footer_branch
                  %152 = sbr.rel target = $region45
                $region50: #{region_loss_v3_forward.1} parent=42 // loop_exit
                  _
              $region43: #{region_loss_v3_forward.1} parent=27 // pred_fallthru
                _
              // Predicated region
              $region51: #{region_loss_v3_forward.1} parent=27 // pred_check
                _
              $region52: #{region_loss_v3_forward.1} parent=27 // pred_check_branch
                %165 = sbr.rel target = $region54
              $region53: #{region_loss_v3_forward.1} parent=27 // pred_region
                _
              $region54: #{region_loss_v3_forward.1} parent=27 // pred_fallthru
                _
            $region28: #{region_loss_v3_forward.1} parent=23 // pred_fallthru
              _
            // Predicated region
            $region29: #{region_loss_v3_forward.1} parent=23 // pred_check
              _
            $region30: #{region_loss_v3_forward.1} parent=23 // pred_check_branch
              %136 = sbr.rel target = $region32
            $region31: #{region_loss_v3_forward.1} parent=23 // pred_region
              loop: start=0, step=1, limit=1
              $region33: #{region_loss_v3_forward.1} parent=31 // loop_pre_header
                _
              $region34: #{region_loss_v3_forward.1} parent=31 // loop_header
                %s139 = sphi 0, %s143
                %p140 = scmp.ge.s32.totalorder %s139, 1
                %s144 = sphi %s130, %s130
                %s145 = sphi %s127, %s127
              $region35: #{region_loss_v3_forward.1} parent=31 // loop_header_branch
                %142 = sbr.rel (%p140) target = $region39
              $region36: #{region_loss_v3_forward.1} parent=31 // loop_body
                %v146 = vld [vmem:[%s144] sm:$0xff]
                %147 = vst [vmem:[%s145] sm:$0xff] %v146
                %v148 = vld [vmem:[%s144 + $0x10] sm:$0xff]
                %149 = vst [vmem:[%s145 + $0x8] sm:$0xff] %v148
              $region37: #{region_loss_v3_forward.1} parent=31 // loop_footer
                %s143 = sadd.s32 1, %s139
              $region38: #{region_loss_v3_forward.1} parent=31 // loop_footer_branch
                %138 = sbr.rel target = $region34
              $region39: #{region_loss_v3_forward.1} parent=31 // loop_exit
                _
            $region32: #{region_loss_v3_forward.1} parent=23 // pred_fallthru
              _
          $region24: #{region_loss_v3_forward.1} parent=19 // pred_fallthru
            _
          %166 = vnop
        $region20: #{region_loss_v3_forward.1} parent=15 // pred_fallthru
          _
        // Predicated region
        $region55: #{region_loss_v3_forward.1} parent=15 // pred_check
          %p167 = pneg %p70
        $region56: #{region_loss_v3_forward.1} parent=15 // pred_check_branch
          %169 = sbr.rel (%p167) target = $region58
        $region57: #{region_loss_v3_forward.1} parent=15 // pred_region
          %s170 = sand.u32 %s60, 1
          %s171 = sand.u32 %s60, 1
          %s172 = smul.addr %s171, 8
          %s173 = scalar_lea.vmem [#allocation3], %s172
          %s174 = sadd.s32 %s15, %s16
          %s175 = smul.addr %s174, 4
          %s176 = scalar_lea.vmem %s1, %s175
          // Predicated region
          $region59: #{region_loss_v3_forward.1} parent=57 // pred_check
            _
          $region60: #{region_loss_v3_forward.1} parent=57 // pred_check_branch
            %178 = sbr.rel (0) target = $region62
          $region61: #{region_loss_v3_forward.1} parent=57 // pred_region
            // Predicated region
            $region63: #{region_loss_v3_forward.1} parent=61 // pred_check
              _
            $region64: #{region_loss_v3_forward.1} parent=61 // pred_check_branch
              %180 = sbr.rel target = $region66
            $region65: #{region_loss_v3_forward.1} parent=61 // pred_region
              // Predicated region
              $region78: #{region_loss_v3_forward.1} parent=65 // pred_check
                _
              $region79: #{region_loss_v3_forward.1} parent=65 // pred_check_branch
                %197 = sbr.rel (0) target = $region81
              $region80: #{region_loss_v3_forward.1} parent=65 // pred_region
                loop: start=0, step=1, limit=1
                $region82: #{region_loss_v3_forward.1} parent=80 // loop_pre_header
                  _
                $region83: #{region_loss_v3_forward.1} parent=80 // loop_header
                  %s199 = sphi 0, %s203
                  %p200 = scmp.ge.s32.totalorder %s199, 1
                  %s204 = sphi %s176, %s176
                  %s205 = sphi %s173, %s173
                $region84: #{region_loss_v3_forward.1} parent=80 // loop_header_branch
                  %202 = sbr.rel (%p200) target = $region88
                $region85: #{region_loss_v3_forward.1} parent=80 // loop_body
                  _
                $region86: #{region_loss_v3_forward.1} parent=80 // loop_footer
                  %s203 = sadd.s32 1, %s199
                $region87: #{region_loss_v3_forward.1} parent=80 // loop_footer_branch
                  %198 = sbr.rel target = $region83
                $region88: #{region_loss_v3_forward.1} parent=80 // loop_exit
                  _
                loop: start=0, step=1, limit=1
                $region89: #{region_loss_v3_forward.1} parent=80 // loop_pre_header
                  _
                $region90: #{region_loss_v3_forward.1} parent=80 // loop_header
                  %s208 = sphi 0, %s212
                  %p209 = scmp.ge.s32.totalorder %s208, 1
                  %s213 = sphi %s176, %s176
                  %s214 = sphi %s173, %s173
                $region91: #{region_loss_v3_forward.1} parent=80 // loop_header_branch
                  %211 = sbr.rel (%p209) target = $region95
                $region92: #{region_loss_v3_forward.1} parent=80 // loop_body
                  %v215 = vld [vmem:[%s213] sm:$0xf]
                  %216 = vst [vmem:[%s214] sm:$0xf] %v215
                  %v217 = vld [vmem:[%s213 + $0x8] sm:$0xf]
                  %218 = vst [vmem:[%s214 + $0x4] sm:$0xf] %v217
                $region93: #{region_loss_v3_forward.1} parent=80 // loop_footer
                  %s212 = sadd.s32 1, %s208
                $region94: #{region_loss_v3_forward.1} parent=80 // loop_footer_branch
                  %207 = sbr.rel target = $region90
                $region95: #{region_loss_v3_forward.1} parent=80 // loop_exit
                  _
              $region81: #{region_loss_v3_forward.1} parent=65 // pred_fallthru
                _
            $region66: #{region_loss_v3_forward.1} parent=61 // pred_fallthru
              _
            // Predicated region
            $region67: #{region_loss_v3_forward.1} parent=61 // pred_check
              _
            $region68: #{region_loss_v3_forward.1} parent=61 // pred_check_branch
              %182 = sbr.rel (0) target = $region70
            $region69: #{region_loss_v3_forward.1} parent=61 // pred_region
              loop: start=0, step=1, limit=1
              $region71: #{region_loss_v3_forward.1} parent=69 // loop_pre_header
                _
              $region72: #{region_loss_v3_forward.1} parent=69 // loop_header
                %s185 = sphi 0, %s189
                %p186 = scmp.ge.s32.totalorder %s185, 1
                %s190 = sphi %s176, %s176
                %s191 = sphi %s173, %s173
              $region73: #{region_loss_v3_forward.1} parent=69 // loop_header_branch
                %188 = sbr.rel (%p186) target = $region77
              $region74: #{region_loss_v3_forward.1} parent=69 // loop_body
                %v192 = vld [vmem:[%s190] sm:$0xf]
                %193 = vst [vmem:[%s191] sm:$0xf] %v192
                %v194 = vld [vmem:[%s190 + $0x8] sm:$0xf]
                %195 = vst [vmem:[%s191 + $0x4] sm:$0xf] %v194
              $region75: #{region_loss_v3_forward.1} parent=69 // loop_footer
                %s189 = sadd.s32 1, %s185
              $region76: #{region_loss_v3_forward.1} parent=69 // loop_footer_branch
                %184 = sbr.rel target = $region72
              $region77: #{region_loss_v3_forward.1} parent=69 // loop_exit
                _
            $region70: #{region_loss_v3_forward.1} parent=61 // pred_fallthru
              _
          $region62: #{region_loss_v3_forward.1} parent=57 // pred_fallthru
            _
          %219 = vnop
        $region58: #{region_loss_v3_forward.1} parent=15 // pred_fallthru
          _
      $region16: #{region_loss_v3_forward.1} parent=5 // pred_fallthru
        _
      %p220 = scmp.le.s32.totalorder 1, %s8
      %p221 = scmp.lt.s32.totalorder %s8, 3
      %p222 = pnand %p220, %p221
      %p223 = pneg %p222
      // Predicated region
      $region96: #{region_loss_v3_forward.1} parent=5 // pred_check
        _
      $region97: #{region_loss_v3_forward.1} parent=5 // pred_check_branch
        %225 = sbr.rel (%p222) target = $region99
      $region98: #{region_loss_v3_forward.1} parent=5 // pred_region
        %s226 = ssub.s32 %s8, 1
        %s227 = sand.u32 %s35, 1
        %s228 = sand.u32 %s35, 1
        %s229 = smul.addr %s228, 16
        %s230 = scalar_lea.vmem [#allocation2], %s229
        // Predicated region
        $region100: #{region_loss_v3_forward.1} parent=98 // pred_check
          %p231 = pneg %p48
        $region101: #{region_loss_v3_forward.1} parent=98 // pred_check_branch
          %233 = sbr.rel (%p231) target = $region103
        $region102: #{region_loss_v3_forward.1} parent=98 // pred_region
          _
        $region103: #{region_loss_v3_forward.1} parent=98 // pred_fallthru
          _
        %s234 = sand.u32 %s63, 1
        %s235 = sand.u32 %s63, 1
        %s236 = smul.addr %s235, 8
        %s237 = scalar_lea.vmem [#allocation3], %s236
        // Predicated region
        $region104: #{region_loss_v3_forward.1} parent=98 // pred_check
          %p238 = pneg %p76
        $region105: #{region_loss_v3_forward.1} parent=98 // pred_check_branch
          %240 = sbr.rel (%p238) target = $region107
        $region106: #{region_loss_v3_forward.1} parent=98 // pred_region
          _
        $region107: #{region_loss_v3_forward.1} parent=98 // pred_fallthru
          _
        %s241 = sand.u32 %s35, 1
        %s242 = sand.u32 %s35, 1
        %s243 = smul.addr %s242, 16
        %s244 = scalar_lea.vmem [#allocation2], %s243
        %p245 = pneg %p48
        %p246 = pneg %p45
        %s247 = sand.u32 %s63, 1
        %s248 = sand.u32 %s63, 1
        %s249 = smul.addr %s248, 8
        %s250 = scalar_lea.vmem [#allocation3], %s249
        %p251 = pneg %p76
        %p252 = pneg %p73
        %p253 = pneg %p102
        %p254 = pneg %p99
        %p255 = scmp.lt.s32.totalorder %s17, 1
        %s256 = scalar_select %p255, %s17, 1
        %s257 = smul.addr %s256, 8
        %s258 = scalar_lea.vmem %s2, %s257
        %s259 = sadd.s32 %s17, %s18
        %s260 = sadd.s32 %s17, %s18
        %p261 = scmp.lt.s32.totalorder %s17, 1
        %s262 = scalar_select %p261, %s17, 1
        %s263 = smul.addr %s262, 8
        %s264 = scalar_lea.vmem %s2, %s263
        %v265 = vld [vmem:[%s230] sm:$0xff]
        %v266 = vld [vmem:[%s230 + $0x8] sm:$0xff]
        %v267 = vld [vmem:[%s237] sm:$0xf]
        %v268 = vld [vmem:[%s237 + $0x4] sm:$0xf]
        %v269 = vunpack.c.l.bf16 %v267
        %v270 = vunpack.c.l.bf16 %v268
        %v271 = vmax.f32 %v265, 0.0
        %v272 = vmax.f32 %v266, 0.0
        %v273 = vand.u32 2147483647, %v265
        %v274 = vand.u32 2147483647, %v266
        %v275 = vsub.f32 0.0, %v273
        %v276 = vsub.f32 0.0, %v274
        %v277 = vmul.f32 %v275, 1.442695
        %v278 = vpow.pop %v277
        %v279 = vmul.f32 %v276, 1.442695
        %v280 = vpow.pop %v279
        %v281 = vadd.f32 %v278, 1.0
        %v282 = vadd.f32 %v280, 1.0
        %v283 = vlog2.pop %v281
        %v284 = vmul.f32 %v283, 0.6931472
        %v285 = vlog2.pop %v282
        %v286 = vmul.f32 %v285, 0.6931472
        %v287 = vadd.f32 %v271, %v284
        %v288 = vadd.f32 %v272, %v286
        %v289 = vmul.f32 %v269, %v287
        %v290 = vmul.f32 %v270, %v288
        %v291 = vadd.f32 %v289, %v290
        %292 = vadd.xlane.f32.xlu0 %v291
        %v293 = vpop.xlane.xlu0 %292
        %v294 = vrot.slane %v293, 4
        %v295 = vadd.f32 %v293, %v294
        %v296 = vrot.slane %v295, 2
        %v297 = vadd.f32 %v295, %v296
        %v298 = vrot.slane %v297, 1
        %v299 = vadd.f32 %v297, %v298
        %s300 = vtos %v299
        %v301 = vadd.f32 %v269, %v270
        %302 = vadd.xlane.f32.xlu0 %v301
        %v303 = vpop.xlane.xlu0 %302
        %v304 = vrot.slane %v303, 4
        %v305 = vadd.f32 %v303, %v304
        %v306 = vrot.slane %v305, 2
        %v307 = vadd.f32 %v305, %v306
        %v308 = vrot.slane %v307, 1
        %v309 = vadd.f32 %v307, %v308
        %s310 = vtos %v309
        %v311 = vlaneseq
        %v312 = vand.u32 %v311, 127
        %v313 = vlaneseq
        %v314 = vshrl.u32 %v313, 7
        %vm315 = vcmp.eq.s32.totalorder %v314, 0
        %vm316 = vcmp.eq.s32.totalorder %v312, 0
        %vm317 = vmand %vm315, %vm316
        %vm318 = vcmp.eq.s32.totalorder %v312, 1
        %vm319 = vmand %vm315, %vm318
        %v320 = vstv %s310
        %v321 = vsel %vm319, %v320, 0.0
        %v322 = vstv %s300
        %v323 = vsel %vm317, %v322, %v321
        %p324 = scmp.eq.s32.totalorder %s18, 0
        // Predicated region
        $region108: #{region_loss_v3_forward.1} parent=98 // pred_check
          %p325 = pneg %p324
        $region109: #{region_loss_v3_forward.1} parent=98 // pred_check_branch
          %327 = sbr.rel (%p325) target = $region111
        $region110: #{region_loss_v3_forward.1} parent=98 // pred_region
          %328 = vst [vmem:[%s264] sm:$0xff] %v323
        $region111: #{region_loss_v3_forward.1} parent=98 // pred_fallthru
          _
        %p329 = scmp.gt.s32.totalorder %s18, 0
        // Predicated region
        $region112: #{region_loss_v3_forward.1} parent=98 // pred_check
          %p330 = pneg %p329
        $region113: #{region_loss_v3_forward.1} parent=98 // pred_check_branch
          %332 = sbr.rel (%p330) target = $region115
        $region114: #{region_loss_v3_forward.1} parent=98 // pred_region
          %v333 = vld [vmem:[%s264] sm:$0xff]
          %v334 = vadd.f32 %v333, %v323
          %335 = vst [vmem:[%s264] sm:$0xff] %v334
        $region115: #{region_loss_v3_forward.1} parent=98 // pred_fallthru
          _
        %p336 = scmp.lt.s32.totalorder %s17, 1
        %s337 = scalar_select %p336, %s17, 1
        %s338 = smul.addr %s337, 8
        %s339 = scalar_lea.vmem %s2, %s338
        // Predicated region
        $region116: #{region_loss_v3_forward.1} parent=98 // pred_check
          %p340 = pneg %p99
        $region117: #{region_loss_v3_forward.1} parent=98 // pred_check_branch
          %342 = sbr.rel (%p340) target = $region119
        $region118: #{region_loss_v3_forward.1} parent=98 // pred_region
          _
        $region119: #{region_loss_v3_forward.1} parent=98 // pred_fallthru
          _
      $region99: #{region_loss_v3_forward.1} parent=5 // pred_fallthru
        _
      %p343 = scmp.le.s32.totalorder 2, %s8
      // Predicated region
      $region120: #{region_loss_v3_forward.1} parent=5 // pred_check
        %p344 = pneg %p343
      $region121: #{region_loss_v3_forward.1} parent=5 // pred_check_branch
        %346 = sbr.rel (%p344) target = $region123
      $region122: #{region_loss_v3_forward.1} parent=5 // pred_region
        %s347 = ssub.s32 %s8, 2
        // Predicated region
        $region124: #{region_loss_v3_forward.1} parent=122 // pred_check
          %p348 = pneg %p105
        $region125: #{region_loss_v3_forward.1} parent=122 // pred_check_branch
          %350 = sbr.rel (%p348) target = $region127
        $region126: #{region_loss_v3_forward.1} parent=122 // pred_region
          %p351 = scmp.lt.s32.totalorder %s19, 1
          %s352 = scalar_select %p351, %s19, 1
          %s353 = smul.addr %s352, 8
          %s354 = scalar_lea.vmem %s2, %s353
        $region127: #{region_loss_v3_forward.1} parent=122 // pred_fallthru
          _
      $region123: #{region_loss_v3_forward.1} parent=5 // pred_fallthru
        _
    $region6: #{region_loss_v3_forward.1} parent=1 // loop_footer
      %s12 = sadd.s32 1, %s8
    $region7: #{region_loss_v3_forward.1} parent=1 // loop_footer_branch
      %7 = sbr.rel target = $region3
    $region8: #{region_loss_v3_forward.1} parent=1 // loop_exit
      _

</llo_original>
